<compile_context>
chip_gen: v7x
topology: tpu7x:2x2x1
jax: 0.10.0
libtpu: 0.0.40
codegen_flags: <defaults>
</compile_context>

<pallas_src>
import jax
import jax.numpy as jnp
from jax.experimental import pallas as pl
from jax.experimental.pallas import tpu as pltpu

B = 2        # batch
S = 8        # sequence length
H = 768      # BERT hidden size (Conv1d in_channels)
O = 128      # Conv1d out_channels
K = 2        # Conv1d kernel size
C = 2        # number of classes
VOCAB = 128  # synthetic vocab for the stand-in embedding
M = B * S    # collapsed batch*time rows fed to the MXU


def bert_cnn_kernel(ids_ref,     # VMEM [M, 1]      int32  token ids
                    mask_ref,    # VMEM [M, 1]      f32    attention mask per token
                    emb_ref,     # VMEM [VOCAB, H]  bf16   synthetic "BERT" features
                    wconv_ref,   # VMEM [H, 2*O]    bf16   fused conv taps [w0 | w1]
                    brow_ref,    # VMEM [M, O]      f32    per-row conv bias (-1e30 on t==S-1)
                    wfc_ref,     # VMEM [O, O]      bf16   fc weight, zero padded
                    bfc_ref,     # VMEM [1, O]      f32    fc bias,   zero padded
                    out_ref):    # VMEM [B, O]      f32    lane-dense logits (padded)
    # ---- fused gather (stand-in for BERT's last_hidden_state) as one-hot MXU matmul ----
    # onehot[r, v] = mask[r] if v == ids[r] else 0  (0/1-valued -> exact in bf16)
    col = jax.lax.broadcasted_iota(jnp.int32, (M, VOCAB), 1)
    onehot = jnp.where(col == ids_ref[...], mask_ref[...], 0.0).astype(jnp.bfloat16)
    # exact gather of bf16 rows (f32 accumulation of 0/1-scaled bf16 values)
    x = jnp.dot(onehot, emb_ref[...],
                preferred_element_type=jnp.float32).astype(jnp.bfloat16)   # [M, H]

    # ---- Conv1d(k=2): ONE [M,H] @ [H,2*O] bf16 matmul, f32 accumulation ----
    y = jnp.dot(x, wconv_ref[...], preferred_element_type=jnp.float32)     # [M, 2*O]
    y_lo = y[:, :O]                                 # tap-0 @ time t   (lane-aligned slice)
    y_hi = y[:, O:]                                 # tap-1 @ time t
    # conv[r] = y_lo[r] + y_hi[r+1]; sublane rotate (== jnp.roll shift=-1) on the XLU
    y_hi_shift = pltpu.roll(y_hi, M - 1, axis=0)    # row r <- row (r+1) % M

    # brow carries the conv bias, with t == S-1 rows (no valid k=2 window /
    # cross-sequence wraparound) set to -1e30: ReLU clamps them to exactly 0,
    # which never wins the temporal max of ReLU outputs (all >= 0).
    conv = jnp.maximum(y_lo + y_hi_shift + brow_ref[...], 0.0)             # [M, O]

    pooled = jnp.max(conv.reshape(B, S, O), axis=1)                        # [B, O]

    # ---- Linear(128 -> 2), zero-padded to N=128 for a lane-dense store ----
    logits = jnp.dot(pooled.astype(jnp.bfloat16), wfc_ref[...],
                     preferred_element_type=jnp.float32) + bfc_ref[...]
    out_ref[...] = logits.astype(out_ref.dtype)


@jax.jit
def bert_cnn_forward(input_ids, attention_mask, params):
    """Full BertCNN forward (synthetic BERT stand-in), one fused pallas_call."""
    ids = input_ids.reshape(M, 1).astype(jnp.int32)
    mask = attention_mask.reshape(M, 1).astype(jnp.float32)

    flops = 2 * M * VOCAB * H + 2 * M * H * (2 * O) + 2 * B * O * O
    bytes_accessed = (params['word_emb'].size * 2      # bf16 embedding table
                      + params['w_conv'].size * 2      # bf16 fused conv weight
                      + params['w_fc_pad'].size * 2    # bf16 padded fc weight
                      + params['b_conv_rows'].size * 4
                      + params['b_fc_pad'].size * 4
                      + B * O * 4 + 2 * M * 4)

    # TODO(synk): at real BERT shapes (e.g. B=32, S=512) tile M with a grid
    # (TM ~ 1024-2048 on v7x under its 64 MiB VMEM, larger on v6e), mark that
    # axis dimension_semantics=("parallel",) to shard across v7x's 2 TCs, and
    # keep w_conv resident via a constant index_map; at B=2, S=8 a single
    # resident block is both correct and fastest.
    logits_full = pl.pallas_call(
        bert_cnn_kernel,
        out_shape=jax.ShapeDtypeStruct((B, O), jnp.float32),
        grid=(1,),
        in_specs=[
            pl.BlockSpec((M, 1), lambda i: (0, 0)),          # ids
            pl.BlockSpec((M, 1), lambda i: (0, 0)),          # mask
            pl.BlockSpec((VOCAB, H), lambda i: (0, 0)),      # whole emb table in VMEM
            pl.BlockSpec((H, 2 * O), lambda i: (0, 0)),      # fused conv weight
            pl.BlockSpec((M, O), lambda i: (0, 0)),          # per-row conv bias
            pl.BlockSpec((O, O), lambda i: (0, 0)),          # padded fc weight (bf16)
            pl.BlockSpec((1, O), lambda i: (0, 0)),          # padded fc bias
        ],
        out_specs=pl.BlockSpec((B, O), lambda i: (0, 0)),
        compiler_params=pltpu.CompilerParams(
            dimension_semantics=("arbitrary",)),
        cost_estimate=pl.CostEstimate(flops=flops, transcendentals=0,
                                      bytes_accessed=bytes_accessed),
    )(ids, mask, params['word_emb'], params['w_conv'], params['b_conv_rows'],
      params['w_fc_pad'], params['b_fc_pad'])

    return logits_full[:, :C]


def init_params(key):
    k_emb, k_cw, k_cb, k_fw, k_fb = jax.random.split(key, 5)
    # torch Conv1d weight layout: [out_channels=O, in_channels=H, kernel=K]
    conv_w = jax.random.normal(k_cw, (O, H, K), jnp.float32) * 0.02
    # fuse the two taps along the output axis: W = [w0 | w1] with wi = w[:,:,i].T
    w_conv = jnp.concatenate([conv_w[:, :, 0].T, conv_w[:, :, 1].T], axis=1)
    b_conv = jax.random.normal(k_cb, (1, O), jnp.float32) * 0.1
    # per-row conv bias with invalid rows (t == S-1) pushed to -1e30: ReLU makes
    # them exactly 0, which can never dominate the max over ReLU'd valid rows.
    invalid_row = (jnp.arange(M) % S == S - 1)[:, None]
    b_conv_rows = jnp.where(invalid_row, jnp.float32(-1e30),
                            jnp.broadcast_to(b_conv, (M, O)))
    # torch Linear weight: [C, O]; transpose + zero-pad N -> 128 (lane-dense out)
    fc_w = jax.random.normal(k_fw, (C, O), jnp.float32) * 0.1
    fc_b = jax.random.normal(k_fb, (C,), jnp.float32) * 0.1
    w_fc_pad = jnp.zeros((O, O), jnp.float32).at[:, :C].set(fc_w.T)
    b_fc_pad = jnp.zeros((1, O), jnp.float32).at[0, :C].set(fc_b)
    return {
        # TODO(synk): the frozen pretrained BERT encoder (embeddings + 12
        # transformer layers) is not reproduced; this deterministic embedding
        # table stands in for last_hidden_state.
        'word_emb': (jax.random.normal(k_emb, (VOCAB, H), jnp.float32) * 0.02
                     ).astype(jnp.bfloat16),
        'w_conv': w_conv.astype(jnp.bfloat16),                     # [H, 2*O]
        'b_conv': b_conv,                                          # [1, O] (reference)
        'b_conv_rows': b_conv_rows,                                # [M, O]
        'w_fc_pad': w_fc_pad.astype(jnp.bfloat16),                 # [O, O] bf16
        'b_fc_pad': b_fc_pad,                                      # [1, O] f32
    }


if __name__ == "__main__":
    key = jax.random.PRNGKey(0)
    k_params, k_ids = jax.random.split(key)

    params = init_params(k_params)
    input_ids = jax.random.randint(k_ids, (B, S), 0, VOCAB, dtype=jnp.int32)
    attention_mask = jnp.ones((B, S), dtype=jnp.int32).at[1, S - 2:].set(0)

    logits = bert_cnn_forward(input_ids, attention_mask, params)
    logits = jax.block_until_ready(logits)

    # ---- pure-JAX f32 reference for the whole fused head ----
    hp = jax.lax.Precision.HIGHEST
    emb = params['word_emb'].astype(jnp.float32)
    seq = emb[input_ids] * attention_mask[..., None].astype(jnp.float32)   # [B,S,H]
    w0 = params['w_conv'][:, :O].astype(jnp.float32)
    w1 = params['w_conv'][:, O:].astype(jnp.float32)
    ref_conv = (jnp.einsum('bsh,ho->bso', seq[:, :-1], w0, precision=hp)
                + jnp.einsum('bsh,ho->bso', seq[:, 1:], w1, precision=hp)
                + params['b_conv'])
    ref_pooled = jnp.max(jnp.maximum(ref_conv, 0.0), axis=1)               # [B, O]
    ref_logits = (jnp.dot(ref_pooled, params['w_fc_pad'].astype(jnp.float32)[:, :C],
                          precision=hp)
                  + params['b_fc_pad'][:, :C])

    assert logits.shape == (B, C)
    assert jnp.allclose(logits, ref_logits, atol=5e-3, rtol=5e-3), (logits, ref_logits)
    print("KERNEL_OK")
</pallas_src>

<mosaic_0001>
module attributes {stable_mosaic.version = 11 : i64} {
  func.func @bert_cnn_kernel(%arg0: i32, %arg1: memref<16x1xi32, #tpu.memory_space<vmem>>, %arg2: memref<16x1xf32, #tpu.memory_space<vmem>>, %arg3: memref<128x768xbf16, #tpu.memory_space<vmem>>, %arg4: memref<768x256xbf16, #tpu.memory_space<vmem>>, %arg5: memref<16x128xf32, #tpu.memory_space<vmem>>, %arg6: memref<128x128xbf16, #tpu.memory_space<vmem>>, %arg7: memref<1x128xf32, #tpu.memory_space<vmem>>, %arg8: memref<2x128xf32, #tpu.memory_space<vmem>>) attributes {dimension_semantics = [#tpu.dimension_semantics<arbitrary>], iteration_bounds = array<i64: 1>, scalar_prefetch = 0 : i64, scratch_operands = 0 : i64, tpu.core_type = #tpu.core_type<tc>, window_params = [{pipeline_mode = #tpu.pipeline_mode<synchronous>, transform_indices = @transform_0, window_bounds = array<i64: 16, 1>}, {pipeline_mode = #tpu.pipeline_mode<synchronous>, transform_indices = @transform_1, window_bounds = array<i64: 16, 1>}, {pipeline_mode = #tpu.pipeline_mode<synchronous>, transform_indices = @transform_2, window_bounds = array<i64: 128, 768>}, {pipeline_mode = #tpu.pipeline_mode<synchronous>, transform_indices = @transform_3, window_bounds = array<i64: 768, 256>}, {pipeline_mode = #tpu.pipeline_mode<synchronous>, transform_indices = @transform_4, window_bounds = array<i64: 16, 128>}, {pipeline_mode = #tpu.pipeline_mode<synchronous>, transform_indices = @transform_5, window_bounds = array<i64: 128, 128>}, {pipeline_mode = #tpu.pipeline_mode<synchronous>, transform_indices = @transform_6, window_bounds = array<i64: 1, 128>}, {pipeline_mode = #tpu.pipeline_mode<synchronous>, transform_indices = @transform_7, window_bounds = array<i64: 2, 128>}]} {
    %0 = tpu.iota {dimensions = array<i32: 1>} : vector<16x128xi32>
    %c0 = arith.constant 0 : index
    %c0_0 = arith.constant 0 : index
    %1 = vector.load %arg1[%c0, %c0_0] : memref<16x1xi32, #tpu.memory_space<vmem>>, vector<16x1xi32>
    %2 = vector.broadcast %1 : vector<16x1xi32> to vector<16x128xi32>
    %3 = arith.cmpi eq, %0, %2 : vector<16x128xi32>
    %c0_1 = arith.constant 0 : index
    %c0_2 = arith.constant 0 : index
    %4 = vector.load %arg2[%c0_1, %c0_2] : memref<16x1xf32, #tpu.memory_space<vmem>>, vector<16x1xf32>
    %cst = arith.constant 0.000000e+00 : f32
    %5 = vector.shape_cast %4 : vector<16x1xf32> to vector<16x1xf32>
    %6 = vector.broadcast %5 : vector<16x1xf32> to vector<16x128xf32>
    %7 = vector.broadcast %cst : f32 to vector<16x128xf32>
    %8 = arith.select %3, %6, %7 : vector<16x128xi1>, vector<16x128xf32>
    %9 = arith.truncf %8 : vector<16x128xf32> to vector<16x128xbf16>
    %c0_3 = arith.constant 0 : index
    %c0_4 = arith.constant 0 : index
    %10 = vector.load %arg3[%c0_3, %c0_4] : memref<128x768xbf16, #tpu.memory_space<vmem>>, vector<128x768xbf16>
    %cst_5 = arith.constant dense<0.000000e+00> : vector<16x768xf32>
    %11 = tpu.matmul %9, %10, %cst_5 {dimension_numbers = #tpu.dot_dimension_numbers<[1], [0], [0], [1], [0, 0, 1, 1], [], []>} : vector<16x128xbf16>, vector<128x768xbf16>, vector<16x768xf32> -> vector<16x768xf32>
    %12 = arith.truncf %11 : vector<16x768xf32> to vector<16x768xbf16>
    %c0_6 = arith.constant 0 : index
    %c0_7 = arith.constant 0 : index
    %13 = vector.load %arg4[%c0_6, %c0_7] : memref<768x256xbf16, #tpu.memory_space<vmem>>, vector<768x256xbf16>
    %cst_8 = arith.constant dense<0.000000e+00> : vector<16x256xf32>
    %14 = tpu.matmul %12, %13, %cst_8 {dimension_numbers = #tpu.dot_dimension_numbers<[1], [0], [0], [1], [0, 0, 1, 1], [], []>} : vector<16x768xbf16>, vector<768x256xbf16>, vector<16x256xf32> -> vector<16x256xf32>
    %15 = vector.extract_strided_slice %14 {offsets = [0, 0], sizes = [16, 128], strides = [1, 1]} : vector<16x256xf32> to vector<16x128xf32>
    %16 = vector.extract_strided_slice %14 {offsets = [0, 128], sizes = [16, 128], strides = [1, 1]} : vector<16x256xf32> to vector<16x128xf32>
    %c15_i32 = arith.constant 15 : i32
    %17 = tpu.dynamic_rotate %16 by %c15_i32 dim 0 : vector<16x128xf32>, i32 -> vector<16x128xf32>
    %18 = arith.addf %15, %17 : vector<16x128xf32>
    %c0_9 = arith.constant 0 : index
    %c0_10 = arith.constant 0 : index
    %19 = vector.load %arg5[%c0_9, %c0_10] : memref<16x128xf32, #tpu.memory_space<vmem>>, vector<16x128xf32>
    %20 = arith.addf %18, %19 : vector<16x128xf32>
    %cst_11 = arith.constant 0.000000e+00 : f32
    %21 = vector.broadcast %cst_11 : f32 to vector<16x128xf32>
    %22 = arith.maximumf %20, %21 : vector<16x128xf32>
    %23 = vector.shape_cast %22 : vector<16x128xf32> to vector<2x8x128xf32>
    %cst_12 = arith.constant dense<0xFF800000> : vector<2x128xf32>
    %24 = vector.multi_reduction <maximumf>, %23, %cst_12 [1] : vector<2x8x128xf32> to vector<2x128xf32>
    %25 = arith.truncf %24 : vector<2x128xf32> to vector<2x128xbf16>
    %c0_13 = arith.constant 0 : index
    %c0_14 = arith.constant 0 : index
    %26 = vector.load %arg6[%c0_13, %c0_14] : memref<128x128xbf16, #tpu.memory_space<vmem>>, vector<128x128xbf16>
    %cst_15 = arith.constant dense<0.000000e+00> : vector<2x128xf32>
    %27 = tpu.matmul %25, %26, %cst_15 {dimension_numbers = #tpu.dot_dimension_numbers<[1], [0], [0], [1], [0, 0, 1, 1], [], []>} : vector<2x128xbf16>, vector<128x128xbf16>, vector<2x128xf32> -> vector<2x128xf32>
    %c0_16 = arith.constant 0 : index
    %c0_17 = arith.constant 0 : index
    %28 = vector.load %arg7[%c0_16, %c0_17] : memref<1x128xf32, #tpu.memory_space<vmem>>, vector<1x128xf32>
    %29 = vector.broadcast %28 : vector<1x128xf32> to vector<2x128xf32>
    %30 = arith.addf %27, %29 : vector<2x128xf32>
    %c0_18 = arith.constant 0 : index
    %c0_19 = arith.constant 0 : index
    %31 = vector.load %arg8[%c0_18, %c0_19] : memref<2x128xf32, #tpu.memory_space<vmem>>, vector<2x128xf32>
    tpu.vector_store %arg8[%c0_18, %c0_19], %30 {strides = array<i32>} : memref<2x128xf32, #tpu.memory_space<vmem>>, vector<2x128xf32>,
    return
  }
  func.func @transform_0(%arg0: i32) -> (i32, i32) {
    %c0_i32 = arith.constant 0 : i32
    %c0_i32_0 = arith.constant 0 : i32
    %c0_i32_1 = arith.constant 0 : i32
    return %c0_i32, %c0_i32_0 : i32, i32
  }
  func.func @transform_1(%arg0: i32) -> (i32, i32) {
    %c0_i32 = arith.constant 0 : i32
    %c0_i32_0 = arith.constant 0 : i32
    %c0_i32_1 = arith.constant 0 : i32
    return %c0_i32, %c0_i32_0 : i32, i32
  }
  func.func @transform_2(%arg0: i32) -> (i32, i32) {
    %c0_i32 = arith.constant 0 : i32
    %c0_i32_0 = arith.constant 0 : i32
    %c0_i32_1 = arith.constant 0 : i32
    return %c0_i32, %c0_i32_0 : i32, i32
  }
  func.func @transform_3(%arg0: i32) -> (i32, i32) {
    %c0_i32 = arith.constant 0 : i32
    %c0_i32_0 = arith.constant 0 : i32
    %c0_i32_1 = arith.constant 0 : i32
    return %c0_i32, %c0_i32_0 : i32, i32
  }
  func.func @transform_4(%arg0: i32) -> (i32, i32) {
    %c0_i32 = arith.constant 0 : i32
    %c0_i32_0 = arith.constant 0 : i32
    %c0_i32_1 = arith.constant 0 : i32
    return %c0_i32, %c0_i32_0 : i32, i32
  }
  func.func @transform_5(%arg0: i32) -> (i32, i32) {
    %c0_i32 = arith.constant 0 : i32
    %c0_i32_0 = arith.constant 0 : i32
    %c0_i32_1 = arith.constant 0 : i32
    return %c0_i32, %c0_i32_0 : i32, i32
  }
  func.func @transform_6(%arg0: i32) -> (i32, i32) {
    %c0_i32 = arith.constant 0 : i32
    %c0_i32_0 = arith.constant 0 : i32
    %c0_i32_1 = arith.constant 0 : i32
    return %c0_i32, %c0_i32_0 : i32, i32
  }
  func.func @transform_7(%arg0: i32) -> (i32, i32) {
    %c0_i32 = arith.constant 0 : i32
    %c0_i32_0 = arith.constant 0 : i32
    %c0_i32_1 = arith.constant 0 : i32
    return %c0_i32, %c0_i32_0 : i32, i32
  }
}

</mosaic_0001>

<llo_original>
// kernel: bert_cnn_forward.1
$region0: #{bert_cnn_forward.1}
  #allocation0 [shape = 'u32[]', space=smem, size = 0x4, offset = 0x4, fixed_abs, tag = 'smem constant byte address 0x4 - core index']
  #allocation1 [shape = 'u32[144,128]{1,0:T(1,128)}', space=vmem, size = 0x12000, scoped, tag = 'internal scratch']
  %s0 = inlined_call_operand.vmem [shape: s32[16,1], index: 0, kind: input, shape index: {}]
  %s1 = inlined_call_operand.vmem [shape: f32[16,1], index: 1, kind: input, shape index: {}]
  %s2 = inlined_call_operand.hbm [shape: bf16[128,768], index: 2, kind: input, shape index: {}]
  %s3 = inlined_call_operand.hbm [shape: bf16[768,256], index: 3, kind: input, shape index: {}]
  %s4 = inlined_call_operand.vmem [shape: f32[16,128], index: 4, kind: input, shape index: {}]
  %s5 = inlined_call_operand.hbm [shape: bf16[128,128], index: 5, kind: input, shape index: {}]
  %s6 = inlined_call_operand.vmem [shape: f32[1,128], index: 6, kind: input, shape index: {}]
  %s7 = inlined_call_operand.hbm [shape: f32[2,128], index: 7, kind: output, shape index: {}]
  %s8 = sld [smem:[#allocation0]]
  $region50: #{bert_cnn_forward.1} parent=0
    _
  %s10 = ssub.s32 1, %s8
  %s11 = scalar_select 0, %s10, %s8
  $region1: #{bert_cnn_forward.1} parent=0
    #allocation2 [shape = 'u8[196608]{0}', space=vmem, size = 0x30000, scoped, tag = 'input window, operand 2, single buffered']
    #allocation3 [shape = 's32[1]{0}', space=sflag, size = 0x4, scoped, tag = 'scoped memory for bert_cnn_forward.1']
    #allocation4 [shape = 's32[1]{0}', space=sflag, size = 0x4, scoped, tag = 'scoped memory for bert_cnn_forward.1']
    #allocation5 [shape = 'u8[393216]{0}', space=vmem, size = 0x60000, scoped, tag = 'input window, operand 3, single buffered']
    #allocation6 [shape = 's32[1]{0}', space=sflag, size = 0x4, scoped, tag = 'scoped memory for bert_cnn_forward.1']
    #allocation7 [shape = 'u8[32768]{0}', space=vmem, size = 0x8000, scoped, tag = 'input window, operand 5, single buffered']
    #allocation8 [shape = 'u8[1024]{0}', space=vmem, size = 0x400, scoped, tag = 'output window, operand 0, single buffered']
    %12 = vsyncpa [#allocation3], 0
    %13 = vsyncpa [#allocation6], 0
    %14 = vsyncpa [#allocation4], 0
    // Predicated region
    $region2: #{bert_cnn_forward.1} parent=1 // pred_check
      _
    $region3: #{bert_cnn_forward.1} parent=1 // pred_check_branch
      %16 = sbr.rel (0) target = $region5
    $region4: #{bert_cnn_forward.1} parent=1 // pred_region
      _
    $region5: #{bert_cnn_forward.1} parent=1 // pred_fallthru
      _
    // Predicated region
    $region6: #{bert_cnn_forward.1} parent=1 // pred_check
      _
    $region7: #{bert_cnn_forward.1} parent=1 // pred_check_branch
      %18 = sbr.rel (0) target = $region9
    $region8: #{bert_cnn_forward.1} parent=1 // pred_region
      _
    $region9: #{bert_cnn_forward.1} parent=1 // pred_fallthru
      _
    // Predicated region
    $region10: #{bert_cnn_forward.1} parent=1 // pred_check
      _
    $region11: #{bert_cnn_forward.1} parent=1 // pred_check_branch
      %20 = sbr.rel (0) target = $region13
    $region12: #{bert_cnn_forward.1} parent=1 // pred_region
      %s22 = ssub.s32 6144, 6144
      %23 = vsyncadd [#allocation3], %s22
      %s24 = sshll.u32 [#allocation2], 4
      %s25 = int_to_ptr.vmem [resolvable:$true] %s24
      %30 = dma.hbm_to_vmem [thread:$0]  %s2, 6144, %s25, [#allocation3], 384, 384, 24
    $region13: #{bert_cnn_forward.1} parent=1 // pred_fallthru
      _
    // Predicated region
    $region14: #{bert_cnn_forward.1} parent=1 // pred_check
      _
    $region15: #{bert_cnn_forward.1} parent=1 // pred_check_branch
      %32 = sbr.rel (0) target = $region17
    $region16: #{bert_cnn_forward.1} parent=1 // pred_region
      %s34 = ssub.s32 12288, 12288
      %35 = vsyncadd [#allocation6], %s34
      %s36 = sshll.u32 [#allocation5], 4
      %s37 = int_to_ptr.vmem [resolvable:$true] %s36
      %42 = dma.hbm_to_vmem [thread:$0]  %s3, 12288, %s37, [#allocation6], 128, 128, 8
    $region17: #{bert_cnn_forward.1} parent=1 // pred_fallthru
      _
    // Predicated region
    $region18: #{bert_cnn_forward.1} parent=1 // pred_check
      _
    $region19: #{bert_cnn_forward.1} parent=1 // pred_check_branch
      %44 = sbr.rel (0) target = $region21
    $region20: #{bert_cnn_forward.1} parent=1 // pred_region
      _
    $region21: #{bert_cnn_forward.1} parent=1 // pred_fallthru
      _
    // Predicated region
    $region22: #{bert_cnn_forward.1} parent=1 // pred_check
      _
    $region23: #{bert_cnn_forward.1} parent=1 // pred_check_branch
      %46 = sbr.rel (0) target = $region25
    $region24: #{bert_cnn_forward.1} parent=1 // pred_region
      %s48 = ssub.s32 1024, 1024
      %49 = vsyncadd [#allocation6], %s48
      %s50 = sshll.u32 [#allocation7], 4
      %s51 = int_to_ptr.vmem [resolvable:$true] %s50
      %56 = dma.hbm_to_vmem [thread:$0]  %s5, 1024, %s51, [#allocation6], 64, 64, 4
    $region25: #{bert_cnn_forward.1} parent=1 // pred_fallthru
      _
    // Predicated region
    $region26: #{bert_cnn_forward.1} parent=1 // pred_check
      _
    $region27: #{bert_cnn_forward.1} parent=1 // pred_check_branch
      %58 = sbr.rel (0) target = $region29
    $region28: #{bert_cnn_forward.1} parent=1 // pred_region
      _
    $region29: #{bert_cnn_forward.1} parent=1 // pred_fallthru
      _
    // Predicated region
    $region30: #{bert_cnn_forward.1} parent=1 // pred_check
      _
    $region31: #{bert_cnn_forward.1} parent=1 // pred_check_branch
      %60 = sbr.rel (0) target = $region33
    $region32: #{bert_cnn_forward.1} parent=1 // pred_region
      %61 = dma.done [#allocation3], 6144
    $region33: #{bert_cnn_forward.1} parent=1 // pred_fallthru
      _
    // Predicated region
    $region34: #{bert_cnn_forward.1} parent=1 // pred_check
      _
    $region35: #{bert_cnn_forward.1} parent=1 // pred_check_branch
      %63 = sbr.rel (0) target = $region37
    $region36: #{bert_cnn_forward.1} parent=1 // pred_region
      %64 = dma.done [#allocation6], 12288
    $region37: #{bert_cnn_forward.1} parent=1 // pred_fallthru
      _
    // Predicated region
    $region38: #{bert_cnn_forward.1} parent=1 // pred_check
      _
    $region39: #{bert_cnn_forward.1} parent=1 // pred_check_branch
      %66 = sbr.rel (0) target = $region41
    $region40: #{bert_cnn_forward.1} parent=1 // pred_region
      %67 = dma.done [#allocation6], 1024
    $region41: #{bert_cnn_forward.1} parent=1 // pred_fallthru
      _
    %v69 = vlaneseq
    %v70 = vand.u32 %v69, 127
    %v71 = vld [vmem:[%s0] sm:$0xff]
    %v72 = vld [vmem:[%s0 + $0x8] sm:$0xff]
    %73 = vset.pattern.permute.xlu0 0
    %74 = vperm.xlu0 %73, %v71
    %v75 = vpop.permute.xlu0 %74
    %76 = vset.pattern.permute.xlu0 0
    %77 = vperm.xlu0 %76, %v72
    %v78 = vpop.permute.xlu0 %77
    %vm79 = vcmp.eq.s32.totalorder %v70, %v75
    %vm80 = vcmp.eq.s32.totalorder %v70, %v78
    %v81 = vld [vmem:[%s1] sm:$0xff]
    %v82 = vld [vmem:[%s1 + $0x8] sm:$0xff]
    %84 = vset.pattern.permute.xlu0 0
    %85 = vperm.xlu0 %84, %v81
    %v86 = vpop.permute.xlu0 %85
    %89 = vset.pattern.permute.xlu0 0
    %90 = vperm.xlu0 %89, %v82
    %v91 = vpop.permute.xlu0 %90
    %v93 = vsel %vm79, %v86, 0.0
    %v94 = vsel %vm80, %v91, 0.0
    %v95 = vpack.c.bf16 %v94, %v93
    %v96 = vld [vmem:[#allocation2] sm:$0xff]
    %v97 = vld [vmem:[#allocation2 + $0x8] sm:$0xff]
    %v98 = vld [vmem:[#allocation2 + $0x10] sm:$0xff]
    %v99 = vld [vmem:[#allocation2 + $0x18] sm:$0xff]
    %v100 = vld [vmem:[#allocation2 + $0x20] sm:$0xff]
    %v101 = vld [vmem:[#allocation2 + $0x28] sm:$0xff]
    %v102 = vld [vmem:[#allocation2 + $0x30] sm:$0xff]
    %v103 = vld [vmem:[#allocation2 + $0x38] sm:$0xff]
    %v104 = vld [vmem:[#allocation2 + $0x40] sm:$0xff]
    %v105 = vld [vmem:[#allocation2 + $0x48] sm:$0xff]
    %v106 = vld [vmem:[#allocation2 + $0x50] sm:$0xff]
    %v107 = vld [vmem:[#allocation2 + $0x58] sm:$0xff]
    %v108 = vld [vmem:[#allocation2 + $0x60] sm:$0xff]
    %v109 = vld [vmem:[#allocation2 + $0x68] sm:$0xff]
    %v110 = vld [vmem:[#allocation2 + $0x70] sm:$0xff]
    %v111 = vld [vmem:[#allocation2 + $0x78] sm:$0xff]
    %v112 = vld [vmem:[#allocation2 + $0x80] sm:$0xff]
    %v113 = vld [vmem:[#allocation2 + $0x88] sm:$0xff]
    %v114 = vld [vmem:[#allocation2 + $0x90] sm:$0xff]
    %v115 = vld [vmem:[#allocation2 + $0x98] sm:$0xff]
    %v116 = vld [vmem:[#allocation2 + $0xa0] sm:$0xff]
    %v117 = vld [vmem:[#allocation2 + $0xa8] sm:$0xff]
    %v118 = vld [vmem:[#allocation2 + $0xb0] sm:$0xff]
    %v119 = vld [vmem:[#allocation2 + $0xb8] sm:$0xff]
    %v120 = vld [vmem:[#allocation2 + $0xc0] sm:$0xff]
    %v121 = vld [vmem:[#allocation2 + $0xc8] sm:$0xff]
    %v122 = vld [vmem:[#allocation2 + $0xd0] sm:$0xff]
    %v123 = vld [vmem:[#allocation2 + $0xd8] sm:$0xff]
    %v124 = vld [vmem:[#allocation2 + $0xe0] sm:$0xff]
    %v125 = vld [vmem:[#allocation2 + $0xe8] sm:$0xff]
    %v126 = vld [vmem:[#allocation2 + $0xf0] sm:$0xff]
    %v127 = vld [vmem:[#allocation2 + $0xf8] sm:$0xff]
    %v128 = vld [vmem:[#allocation2 + $0x100] sm:$0xff]
    %v129 = vld [vmem:[#allocation2 + $0x108] sm:$0xff]
    %v130 = vld [vmem:[#allocation2 + $0x110] sm:$0xff]
    %v131 = vld [vmem:[#allocation2 + $0x118] sm:$0xff]
    %v132 = vld [vmem:[#allocation2 + $0x120] sm:$0xff]
    %v133 = vld [vmem:[#allocation2 + $0x128] sm:$0xff]
    %v134 = vld [vmem:[#allocation2 + $0x130] sm:$0xff]
    %v135 = vld [vmem:[#allocation2 + $0x138] sm:$0xff]
    %v136 = vld [vmem:[#allocation2 + $0x140] sm:$0xff]
    %v137 = vld [vmem:[#allocation2 + $0x148] sm:$0xff]
    %v138 = vld [vmem:[#allocation2 + $0x150] sm:$0xff]
    %v139 = vld [vmem:[#allocation2 + $0x158] sm:$0xff]
    %v140 = vld [vmem:[#allocation2 + $0x160] sm:$0xff]
    %v141 = vld [vmem:[#allocation2 + $0x168] sm:$0xff]
    %v142 = vld [vmem:[#allocation2 + $0x170] sm:$0xff]
    %v143 = vld [vmem:[#allocation2 + $0x178] sm:$0xff]
    %v192 = vunpack.c.l.b16 %v96
    %v193 = vunpack.c.h.b16 %v96
    %v194 = vunpack.c.l.b16 %v97
    %v195 = vunpack.c.h.b16 %v97
    %v196 = vunpack.c.l.b16 %v98
    %v197 = vunpack.c.h.b16 %v98
    %v198 = vunpack.c.l.b16 %v99
    %v199 = vunpack.c.h.b16 %v99
    %v200 = vunpack.c.l.b16 %v100
    %v201 = vunpack.c.h.b16 %v100
    %v202 = vunpack.c.l.b16 %v101
    %v203 = vunpack.c.h.b16 %v101
    %v204 = vunpack.c.l.b16 %v102
    %v205 = vunpack.c.h.b16 %v102
    %v206 = vunpack.c.l.b16 %v103
    %v207 = vunpack.c.h.b16 %v103
    %v208 = vunpack.c.l.b16 %v104
    %v209 = vunpack.c.h.b16 %v104
    %v210 = vunpack.c.l.b16 %v105
    %v211 = vunpack.c.h.b16 %v105
    %v212 = vunpack.c.l.b16 %v106
    %v213 = vunpack.c.h.b16 %v106
    %v214 = vunpack.c.l.b16 %v107
    %v215 = vunpack.c.h.b16 %v107
    %v216 = vunpack.c.l.b16 %v108
    %v217 = vunpack.c.h.b16 %v108
    %v218 = vunpack.c.l.b16 %v109
    %v219 = vunpack.c.h.b16 %v109
    %v220 = vunpack.c.l.b16 %v110
    %v221 = vunpack.c.h.b16 %v110
    %v222 = vunpack.c.l.b16 %v111
    %v223 = vunpack.c.h.b16 %v111
    %v224 = vunpack.c.l.b16 %v112
    %v225 = vunpack.c.h.b16 %v112
    %v226 = vunpack.c.l.b16 %v113
    %v227 = vunpack.c.h.b16 %v113
    %v228 = vunpack.c.l.b16 %v114
    %v229 = vunpack.c.h.b16 %v114
    %v230 = vunpack.c.l.b16 %v115
    %v231 = vunpack.c.h.b16 %v115
    %v232 = vunpack.c.l.b16 %v116
    %v233 = vunpack.c.h.b16 %v116
    %v234 = vunpack.c.l.b16 %v117
    %v235 = vunpack.c.h.b16 %v117
    %v236 = vunpack.c.l.b16 %v118
    %v237 = vunpack.c.h.b16 %v118
    %v238 = vunpack.c.l.b16 %v119
    %v239 = vunpack.c.h.b16 %v119
    %v240 = vunpack.c.l.b16 %v120
    %v241 = vunpack.c.h.b16 %v120
    %v242 = vunpack.c.l.b16 %v121
    %v243 = vunpack.c.h.b16 %v121
    %v244 = vunpack.c.l.b16 %v122
    %v245 = vunpack.c.h.b16 %v122
    %v246 = vunpack.c.l.b16 %v123
    %v247 = vunpack.c.h.b16 %v123
    %v248 = vunpack.c.l.b16 %v124
    %v249 = vunpack.c.h.b16 %v124
    %v250 = vunpack.c.l.b16 %v125
    %v251 = vunpack.c.h.b16 %v125
    %v252 = vunpack.c.l.b16 %v126
    %v253 = vunpack.c.h.b16 %v126
    %v254 = vunpack.c.l.b16 %v127
    %v255 = vunpack.c.h.b16 %v127
    %v256 = vunpack.c.l.b16 %v128
    %v257 = vunpack.c.h.b16 %v128
    %v258 = vunpack.c.l.b16 %v129
    %v259 = vunpack.c.h.b16 %v129
    %v260 = vunpack.c.l.b16 %v130
    %v261 = vunpack.c.h.b16 %v130
    %v262 = vunpack.c.l.b16 %v131
    %v263 = vunpack.c.h.b16 %v131
    %v264 = vunpack.c.l.b16 %v132
    %v265 = vunpack.c.h.b16 %v132
    %v266 = vunpack.c.l.b16 %v133
    %v267 = vunpack.c.h.b16 %v133
    %v268 = vunpack.c.l.b16 %v134
    %v269 = vunpack.c.h.b16 %v134
    %v270 = vunpack.c.l.b16 %v135
    %v271 = vunpack.c.h.b16 %v135
    %v272 = vunpack.c.l.b16 %v136
    %v273 = vunpack.c.h.b16 %v136
    %v274 = vunpack.c.l.b16 %v137
    %v275 = vunpack.c.h.b16 %v137
    %v276 = vunpack.c.l.b16 %v138
    %v277 = vunpack.c.h.b16 %v138
    %v278 = vunpack.c.l.b16 %v139
    %v279 = vunpack.c.h.b16 %v139
    %v280 = vunpack.c.l.b16 %v140
    %v281 = vunpack.c.h.b16 %v140
    %v282 = vunpack.c.l.b16 %v141
    %v283 = vunpack.c.h.b16 %v141
    %v284 = vunpack.c.l.b16 %v142
    %v285 = vunpack.c.h.b16 %v142
    %v286 = vunpack.c.l.b16 %v143
    %v287 = vunpack.c.h.b16 %v143
    %v288 = vpack.c.b16 %v198, %v192
    %v289 = vpack.c.b16 %v199, %v193
    %v290 = vpack.c.b16 %v200, %v194
    %v291 = vpack.c.b16 %v201, %v195
    %v292 = vpack.c.b16 %v202, %v196
    %v293 = vpack.c.b16 %v203, %v197
    %v294 = vpack.c.b16 %v210, %v204
    %v295 = vpack.c.b16 %v211, %v205
    %v296 = vpack.c.b16 %v212, %v206
    %v297 = vpack.c.b16 %v213, %v207
    %v298 = vpack.c.b16 %v214, %v208
    %v299 = vpack.c.b16 %v215, %v209
    %v300 = vpack.c.b16 %v222, %v216
    %v301 = vpack.c.b16 %v223, %v217
    %v302 = vpack.c.b16 %v224, %v218
    %v303 = vpack.c.b16 %v225, %v219
    %v304 = vpack.c.b16 %v226, %v220
    %v305 = vpack.c.b16 %v227, %v221
    %v306 = vpack.c.b16 %v234, %v228
    %v307 = vpack.c.b16 %v235, %v229
    %v308 = vpack.c.b16 %v236, %v230
    %v309 = vpack.c.b16 %v237, %v231
    %v310 = vpack.c.b16 %v238, %v232
    %v311 = vpack.c.b16 %v239, %v233
    %v312 = vpack.c.b16 %v246, %v240
    %v313 = vpack.c.b16 %v247, %v241
    %v314 = vpack.c.b16 %v248, %v242
    %v315 = vpack.c.b16 %v249, %v243
    %v316 = vpack.c.b16 %v250, %v244
    %v317 = vpack.c.b16 %v251, %v245
    %v318 = vpack.c.b16 %v258, %v252
    %v319 = vpack.c.b16 %v259, %v253
    %v320 = vpack.c.b16 %v260, %v254
    %v321 = vpack.c.b16 %v261, %v255
    %v322 = vpack.c.b16 %v262, %v256
    %v323 = vpack.c.b16 %v263, %v257
    %v324 = vpack.c.b16 %v270, %v264
    %v325 = vpack.c.b16 %v271, %v265
    %v326 = vpack.c.b16 %v272, %v266
    %v327 = vpack.c.b16 %v273, %v267
    %v328 = vpack.c.b16 %v274, %v268
    %v329 = vpack.c.b16 %v275, %v269
    %v330 = vpack.c.b16 %v282, %v276
    %v331 = vpack.c.b16 %v283, %v277
    %v332 = vpack.c.b16 %v284, %v278
    %v333 = vpack.c.b16 %v285, %v279
    %v334 = vpack.c.b16 %v286, %v280
    %v335 = vpack.c.b16 %v287, %v281
    %384 = vmatprep.subr.bf16.mxu0 %v289
    %385 = vmatpush1.bf16.msra.mxu0 %v288
    %386 = vmatprep.subr.bf16.mxu0 %v295
    %387 = vmatpush1.bf16.msra.mxu0 %v294
    %388 = vmatprep.subr.bf16.mxu0 %v301
    %389 = vmatpush1.bf16.msra.mxu0 %v300
    %390 = vmatprep.subr.bf16.mxu0 %v307
    %391 = vmatpush1.bf16.msra.mxu0 %v306
    %392 = vmatprep.subr.bf16.mxu0 %v313
    %393 = vmatpush1.bf16.msra.mxu0 %v312
    %394 = vmatprep.subr.bf16.mxu0 %v319
    %395 = vmatpush1.bf16.msra.mxu0 %v318
    %396 = vmatprep.subr.bf16.mxu0 %v325
    %397 = vmatpush1.bf16.msra.mxu0 %v324
    %398 = vmatprep.subr.bf16.mxu0 %v331
    %399 = vmatpush1.bf16.msra.mxu0 %v330
    %400 = vmatprep.subr.bf16.mxu0 0
    %401 = vmatpush1.bf16.msra.mxu0 0
    %402 = vmatprep.subr.bf16.mxu0 0
    %403 = vmatpush1.bf16.msra.mxu0 0
    %404 = vmatprep.subr.bf16.mxu0 0
    %405 = vmatpush1.bf16.msra.mxu0 0
    %406 = vmatprep.subr.bf16.mxu0 0
    %407 = vmatpush1.bf16.msra.mxu0 0
    %408 = vmatprep.subr.bf16.mxu0 0
    %409 = vmatpush1.bf16.msra.mxu0 0
    %410 = vmatprep.subr.bf16.mxu0 0
    %411 = vmatpush1.bf16.msra.mxu0 0
    %412 = vmatprep.subr.bf16.mxu0 0
    %413 = vmatpush1.bf16.msra.mxu0 0
    %414 = vmatprep.subr.bf16.mxu0 0
    %415 = vmatpush1.bf16.msra.mxu0 0
    %416 = vmatprep.mubr.bf16.mxu0 0
    %417 = vmatmul.mubr.bf16.gmra.mrb[0].mxu0 %v95
    %v418 = vpop.f32.mrb[0].mxu0
    %v419 = vadd.f32 0.0, %v418
    %v420 = vpop.f32.mrb[0].mxu0
    %v421 = vadd.f32 0.0, %v420
    %v422 = vpop.f32.mrb[0].mxu0
    %v423 = vadd.f32 0.0, %v422
    %v424 = vpop.f32.mrb[0].mxu0
    %v425 = vadd.f32 0.0, %v424
    %426 = vdwg.mxu0
    %427 = vmatprep.subr.bf16.mxu0 %v291
    %428 = vmatpush1.bf16.msra.mxu0 %v290
    %429 = vmatprep.subr.bf16.mxu0 %v297
    %430 = vmatpush1.bf16.msra.mxu0 %v296
    %431 = vmatprep.subr.bf16.mxu0 %v303
    %432 = vmatpush1.bf16.msra.mxu0 %v302
    %433 = vmatprep.subr.bf16.mxu0 %v309
    %434 = vmatpush1.bf16.msra.mxu0 %v308
    %435 = vmatprep.subr.bf16.mxu0 %v315
    %436 = vmatpush1.bf16.msra.mxu0 %v314
    %437 = vmatprep.subr.bf16.mxu0 %v321
    %438 = vmatpush1.bf16.msra.mxu0 %v320
    %439 = vmatprep.subr.bf16.mxu0 %v327
    %440 = vmatpush1.bf16.msra.mxu0 %v326
    %441 = vmatprep.subr.bf16.mxu0 %v333
    %442 = vmatpush1.bf16.msra.mxu0 %v332
    %443 = vmatprep.subr.bf16.mxu0 0
    %444 = vmatpush1.bf16.msra.mxu0 0
    %445 = vmatprep.subr.bf16.mxu0 0
    %446 = vmatpush1.bf16.msra.mxu0 0
    %447 = vmatprep.subr.bf16.mxu0 0
    %448 = vmatpush1.bf16.msra.mxu0 0
    %449 = vmatprep.subr.bf16.mxu0 0
    %450 = vmatpush1.bf16.msra.mxu0 0
    %451 = vmatprep.subr.bf16.mxu0 0
    %452 = vmatpush1.bf16.msra.mxu0 0
    %453 = vmatprep.subr.bf16.mxu0 0
    %454 = vmatpush1.bf16.msra.mxu0 0
    %455 = vmatprep.subr.bf16.mxu0 0
    %456 = vmatpush1.bf16.msra.mxu0 0
    %457 = vmatprep.subr.bf16.mxu0 0
    %458 = vmatpush1.bf16.msra.mxu0 0
    %459 = vmatprep.mubr.bf16.mxu0 0
    %460 = vmatmul.mubr.bf16.gmra.mrb[0].mxu0 %v95
    %v461 = vpop.f32.mrb[0].mxu0
    %v462 = vadd.f32 0.0, %v461
    %v463 = vpop.f32.mrb[0].mxu0
    %v464 = vadd.f32 0.0, %v463
    %v465 = vpop.f32.mrb[0].mxu0
    %v466 = vadd.f32 0.0, %v465
    %v467 = vpop.f32.mrb[0].mxu0
    %v468 = vadd.f32 0.0, %v467
    %469 = vdwg.mxu0
    %470 = vmatprep.subr.bf16.mxu0 %v293
    %471 = vmatpush1.bf16.msra.mxu0 %v292
    %472 = vmatprep.subr.bf16.mxu0 %v299
    %473 = vmatpush1.bf16.msra.mxu0 %v298
    %474 = vmatprep.subr.bf16.mxu0 %v305
    %475 = vmatpush1.bf16.msra.mxu0 %v304
    %476 = vmatprep.subr.bf16.mxu0 %v311
    %477 = vmatpush1.bf16.msra.mxu0 %v310
    %478 = vmatprep.subr.bf16.mxu0 %v317
    %479 = vmatpush1.bf16.msra.mxu0 %v316
    %480 = vmatprep.subr.bf16.mxu0 %v323
    %481 = vmatpush1.bf16.msra.mxu0 %v322
    %482 = vmatprep.subr.bf16.mxu0 %v329
    %483 = vmatpush1.bf16.msra.mxu0 %v328
    %484 = vmatprep.subr.bf16.mxu0 %v335
    %485 = vmatpush1.bf16.msra.mxu0 %v334
    %486 = vmatprep.subr.bf16.mxu0 0
    %487 = vmatpush1.bf16.msra.mxu0 0
    %488 = vmatprep.subr.bf16.mxu0 0
    %489 = vmatpush1.bf16.msra.mxu0 0
    %490 = vmatprep.subr.bf16.mxu0 0
    %491 = vmatpush1.bf16.msra.mxu0 0
    %492 = vmatprep.subr.bf16.mxu0 0
    %493 = vmatpush1.bf16.msra.mxu0 0
    %494 = vmatprep.subr.bf16.mxu0 0
    %495 = vmatpush1.bf16.msra.mxu0 0
    %496 = vmatprep.subr.bf16.mxu0 0
    %497 = vmatpush1.bf16.msra.mxu0 0
    %498 = vmatprep.subr.bf16.mxu0 0
    %499 = vmatpush1.bf16.msra.mxu0 0
    %500 = vmatprep.subr.bf16.mxu0 0
    %501 = vmatpush1.bf16.msra.mxu0 0
    %502 = vmatprep.mubr.bf16.mxu0 0
    %503 = vmatmul.mubr.bf16.gmra.mrb[0].mxu0 %v95
    %v504 = vpop.f32.mrb[0].mxu0
    %v505 = vadd.f32 0.0, %v504
    %v506 = vpop.f32.mrb[0].mxu0
    %v507 = vadd.f32 0.0, %v506
    %v508 = vpop.f32.mrb[0].mxu0
    %v509 = vadd.f32 0.0, %v508
    %v510 = vpop.f32.mrb[0].mxu0
    %v511 = vadd.f32 0.0, %v510
    %512 = vdwg.mxu0
    %v513 = vpack.c.bf16 %v423, %v419
    %v514 = vpack.c.bf16 %v425, %v421
    %v515 = vpack.c.bf16 %v466, %v462
    %v516 = vpack.c.bf16 %v468, %v464
    %v517 = vpack.c.bf16 %v509, %v505
    %v518 = vpack.c.bf16 %v511, %v507
    %v519 = vld [vmem:[#allocation5] sm:$0xff]
    %v520 = vld [vmem:[#allocation5 + $0x8] sm:$0xff]
    %v521 = vld [vmem:[#allocation5 + $0x10] sm:$0xff]
    %v522 = vld [vmem:[#allocation5 + $0x18] sm:$0xff]
    %v523 = vld [vmem:[#allocation5 + $0x20] sm:$0xff]
    %v524 = vld [vmem:[#allocation5 + $0x28] sm:$0xff]
    %v525 = vld [vmem:[#allocation5 + $0x30] sm:$0xff]
    %v526 = vld [vmem:[#allocation5 + $0x38] sm:$0xff]
    %v527 = vld [vmem:[#allocation5 + $0x40] sm:$0xff]
    %v528 = vld [vmem:[#allocation5 + $0x48] sm:$0xff]
    %v529 = vld [vmem:[#allocation5 + $0x50] sm:$0xff]
    %v530 = vld [vmem:[#allocation5 + $0x58] sm:$0xff]
    %v531 = vld [vmem:[#allocation5 + $0x60] sm:$0xff]
    %v532 = vld [vmem:[#allocation5 + $0x68] sm:$0xff]
    %v533 = vld [vmem:[#allocation5 + $0x70] sm:$0xff]
    %v534 = vld [vmem:[#allocation5 + $0x78] sm:$0xff]
    %v535 = vld [vmem:[#allocation5 + $0x80] sm:$0xff]
    %v536 = vld [vmem:[#allocation5 + $0x88] sm:$0xff]
    %v537 = vld [vmem:[#allocation5 + $0x90] sm:$0xff]
    %v538 = vld [vmem:[#allocation5 + $0x98] sm:$0xff]
    %v539 = vld [vmem:[#allocation5 + $0xa0] sm:$0xff]
    %v540 = vld [vmem:[#allocation5 + $0xa8] sm:$0xff]
    %v541 = vld [vmem:[#allocation5 + $0xb0] sm:$0xff]
    %v542 = vld [vmem:[#allocation5 + $0xb8] sm:$0xff]
    %v543 = vld [vmem:[#allocation5 + $0xc0] sm:$0xff]
    %v544 = vld [vmem:[#allocation5 + $0xc8] sm:$0xff]
    %v545 = vld [vmem:[#allocation5 + $0xd0] sm:$0xff]
    %v546 = vld [vmem:[#allocation5 + $0xd8] sm:$0xff]
    %v547 = vld [vmem:[#allocation5 + $0xe0] sm:$0xff]
    %v548 = vld [vmem:[#allocation5 + $0xe8] sm:$0xff]
    %v549 = vld [vmem:[#allocation5 + $0xf0] sm:$0xff]
    %v550 = vld [vmem:[#allocation5 + $0xf8] sm:$0xff]
    %v551 = vld [vmem:[#allocation5 + $0x100] sm:$0xff]
    %v552 = vld [vmem:[#allocation5 + $0x108] sm:$0xff]
    %v553 = vld [vmem:[#allocation5 + $0x110] sm:$0xff]
    %v554 = vld [vmem:[#allocation5 + $0x118] sm:$0xff]
    %v555 = vld [vmem:[#allocation5 + $0x120] sm:$0xff]
    %v556 = vld [vmem:[#allocation5 + $0x128] sm:$0xff]
    %v557 = vld [vmem:[#allocation5 + $0x130] sm:$0xff]
    %v558 = vld [vmem:[#allocation5 + $0x138] sm:$0xff]
    %v559 = vld [vmem:[#allocation5 + $0x140] sm:$0xff]
    %v560 = vld [vmem:[#allocation5 + $0x148] sm:$0xff]
    %v561 = vld [vmem:[#allocation5 + $0x150] sm:$0xff]
    %v562 = vld [vmem:[#allocation5 + $0x158] sm:$0xff]
    %v563 = vld [vmem:[#allocation5 + $0x160] sm:$0xff]
    %v564 = vld [vmem:[#allocation5 + $0x168] sm:$0xff]
    %v565 = vld [vmem:[#allocation5 + $0x170] sm:$0xff]
    %v566 = vld [vmem:[#allocation5 + $0x178] sm:$0xff]
    %v567 = vld [vmem:[#allocation5 + $0x180] sm:$0xff]
    %v568 = vld [vmem:[#allocation5 + $0x188] sm:$0xff]
    %v569 = vld [vmem:[#allocation5 + $0x190] sm:$0xff]
    %v570 = vld [vmem:[#allocation5 + $0x198] sm:$0xff]
    %v571 = vld [vmem:[#allocation5 + $0x1a0] sm:$0xff]
    %v572 = vld [vmem:[#allocation5 + $0x1a8] sm:$0xff]
    %v573 = vld [vmem:[#allocation5 + $0x1b0] sm:$0xff]
    %v574 = vld [vmem:[#allocation5 + $0x1b8] sm:$0xff]
    %v575 = vld [vmem:[#allocation5 + $0x1c0] sm:$0xff]
    %v576 = vld [vmem:[#allocation5 + $0x1c8] sm:$0xff]
    %v577 = vld [vmem:[#allocation5 + $0x1d0] sm:$0xff]
    %v578 = vld [vmem:[#allocation5 + $0x1d8] sm:$0xff]
    %v579 = vld [vmem:[#allocation5 + $0x1e0] sm:$0xff]
    %v580 = vld [vmem:[#allocation5 + $0x1e8] sm:$0xff]
    %v581 = vld [vmem:[#allocation5 + $0x1f0] sm:$0xff]
    %v582 = vld [vmem:[#allocation5 + $0x1f8] sm:$0xff]
    %v583 = vld [vmem:[#allocation5 + $0x200] sm:$0xff]
    %v584 = vld [vmem:[#allocation5 + $0x208] sm:$0xff]
    %v585 = vld [vmem:[#allocation5 + $0x210] sm:$0xff]
    %v586 = vld [vmem:[#allocation5 + $0x218] sm:$0xff]
    %v587 = vld [vmem:[#allocation5 + $0x220] sm:$0xff]
    %v588 = vld [vmem:[#allocation5 + $0x228] sm:$0xff]
    %v589 = vld [vmem:[#allocation5 + $0x230] sm:$0xff]
    %v590 = vld [vmem:[#allocation5 + $0x238] sm:$0xff]
    %v591 = vld [vmem:[#allocation5 + $0x240] sm:$0xff]
    %v592 = vld [vmem:[#allocation5 + $0x248] sm:$0xff]
    %v593 = vld [vmem:[#allocation5 + $0x250] sm:$0xff]
    %v594 = vld [vmem:[#allocation5 + $0x258] sm:$0xff]
    %v595 = vld [vmem:[#allocation5 + $0x260] sm:$0xff]
    %v596 = vld [vmem:[#allocation5 + $0x268] sm:$0xff]
    %v597 = vld [vmem:[#allocation5 + $0x270] sm:$0xff]
    %v598 = vld [vmem:[#allocation5 + $0x278] sm:$0xff]
    %v599 = vld [vmem:[#allocation5 + $0x280] sm:$0xff]
    %v600 = vld [vmem:[#allocation5 + $0x288] sm:$0xff]
    %v601 = vld [vmem:[#allocation5 + $0x290] sm:$0xff]
    %v602 = vld [vmem:[#allocation5 + $0x298] sm:$0xff]
    %v603 = vld [vmem:[#allocation5 + $0x2a0] sm:$0xff]
    %v604 = vld [vmem:[#allocation5 + $0x2a8] sm:$0xff]
    %v605 = vld [vmem:[#allocation5 + $0x2b0] sm:$0xff]
    %v606 = vld [vmem:[#allocation5 + $0x2b8] sm:$0xff]
    %v607 = vld [vmem:[#allocation5 + $0x2c0] sm:$0xff]
    %v608 = vld [vmem:[#allocation5 + $0x2c8] sm:$0xff]
    %v609 = vld [vmem:[#allocation5 + $0x2d0] sm:$0xff]
    %v610 = vld [vmem:[#allocation5 + $0x2d8] sm:$0xff]
    %v611 = vld [vmem:[#allocation5 + $0x2e0] sm:$0xff]
    %v612 = vld [vmem:[#allocation5 + $0x2e8] sm:$0xff]
    %v613 = vld [vmem:[#allocation5 + $0x2f0] sm:$0xff]
    %v614 = vld [vmem:[#allocation5 + $0x2f8] sm:$0xff]
    %v711 = vunpack.c.l.b16 %v519
    %v712 = vunpack.c.h.b16 %v519
    %v713 = vunpack.c.l.b16 %v520
    %v714 = vunpack.c.h.b16 %v520
    %v715 = vunpack.c.l.b16 %v521
    %v716 = vunpack.c.h.b16 %v521
    %v717 = vunpack.c.l.b16 %v522
    %v718 = vunpack.c.h.b16 %v522
    %v719 = vunpack.c.l.b16 %v523
    %v720 = vunpack.c.h.b16 %v523
    %v721 = vunpack.c.l.b16 %v524
    %v722 = vunpack.c.h.b16 %v524
    %v723 = vunpack.c.l.b16 %v525
    %v724 = vunpack.c.h.b16 %v525
    %v725 = vunpack.c.l.b16 %v526
    %v726 = vunpack.c.h.b16 %v526
    %v727 = vunpack.c.l.b16 %v527
    %v728 = vunpack.c.h.b16 %v527
    %v729 = vunpack.c.l.b16 %v528
    %v730 = vunpack.c.h.b16 %v528
    %v731 = vunpack.c.l.b16 %v529
    %v732 = vunpack.c.h.b16 %v529
    %v733 = vunpack.c.l.b16 %v530
    %v734 = vunpack.c.h.b16 %v530
    %v735 = vunpack.c.l.b16 %v531
    %v736 = vunpack.c.h.b16 %v531
    %v737 = vunpack.c.l.b16 %v532
    %v738 = vunpack.c.h.b16 %v532
    %v739 = vunpack.c.l.b16 %v533
    %v740 = vunpack.c.h.b16 %v533
    %v741 = vunpack.c.l.b16 %v534
    %v742 = vunpack.c.h.b16 %v534
    %v743 = vunpack.c.l.b16 %v535
    %v744 = vunpack.c.h.b16 %v535
    %v745 = vunpack.c.l.b16 %v536
    %v746 = vunpack.c.h.b16 %v536
    %v747 = vunpack.c.l.b16 %v537
    %v748 = vunpack.c.h.b16 %v537
    %v749 = vunpack.c.l.b16 %v538
    %v750 = vunpack.c.h.b16 %v538
    %v751 = vunpack.c.l.b16 %v539
    %v752 = vunpack.c.h.b16 %v539
    %v753 = vunpack.c.l.b16 %v540
    %v754 = vunpack.c.h.b16 %v540
    %v755 = vunpack.c.l.b16 %v541
    %v756 = vunpack.c.h.b16 %v541
    %v757 = vunpack.c.l.b16 %v542
    %v758 = vunpack.c.h.b16 %v542
    %v759 = vunpack.c.l.b16 %v543
    %v760 = vunpack.c.h.b16 %v543
    %v761 = vunpack.c.l.b16 %v544
    %v762 = vunpack.c.h.b16 %v544
    %v763 = vunpack.c.l.b16 %v545
    %v764 = vunpack.c.h.b16 %v545
    %v765 = vunpack.c.l.b16 %v546
    %v766 = vunpack.c.h.b16 %v546
    %v767 = vunpack.c.l.b16 %v547
    %v768 = vunpack.c.h.b16 %v547
    %v769 = vunpack.c.l.b16 %v548
    %v770 = vunpack.c.h.b16 %v548
    %v771 = vunpack.c.l.b16 %v549
    %v772 = vunpack.c.h.b16 %v549
    %v773 = vunpack.c.l.b16 %v550
    %v774 = vunpack.c.h.b16 %v550
    %v775 = vunpack.c.l.b16 %v551
    %v776 = vunpack.c.h.b16 %v551
    %v777 = vunpack.c.l.b16 %v552
    %v778 = vunpack.c.h.b16 %v552
    %v779 = vunpack.c.l.b16 %v553
    %v780 = vunpack.c.h.b16 %v553
    %v781 = vunpack.c.l.b16 %v554
    %v782 = vunpack.c.h.b16 %v554
    %v783 = vunpack.c.l.b16 %v555
    %v784 = vunpack.c.h.b16 %v555
    %v785 = vunpack.c.l.b16 %v556
    %v786 = vunpack.c.h.b16 %v556
    %v787 = vunpack.c.l.b16 %v557
    %v788 = vunpack.c.h.b16 %v557
    %v789 = vunpack.c.l.b16 %v558
    %v790 = vunpack.c.h.b16 %v558
    %v791 = vunpack.c.l.b16 %v559
    %v792 = vunpack.c.h.b16 %v559
    %v793 = vunpack.c.l.b16 %v560
    %v794 = vunpack.c.h.b16 %v560
    %v795 = vunpack.c.l.b16 %v561
    %v796 = vunpack.c.h.b16 %v561
    %v797 = vunpack.c.l.b16 %v562
    %v798 = vunpack.c.h.b16 %v562
    %v799 = vunpack.c.l.b16 %v563
    %v800 = vunpack.c.h.b16 %v563
    %v801 = vunpack.c.l.b16 %v564
    %v802 = vunpack.c.h.b16 %v564
    %v803 = vunpack.c.l.b16 %v565
    %v804 = vunpack.c.h.b16 %v565
    %v805 = vunpack.c.l.b16 %v566
    %v806 = vunpack.c.h.b16 %v566
    %v807 = vunpack.c.l.b16 %v567
    %v808 = vunpack.c.h.b16 %v567
    %v809 = vunpack.c.l.b16 %v568
    %v810 = vunpack.c.h.b16 %v568
    %v811 = vunpack.c.l.b16 %v569
    %v812 = vunpack.c.h.b16 %v569
    %v813 = vunpack.c.l.b16 %v570
    %v814 = vunpack.c.h.b16 %v570
    %v815 = vunpack.c.l.b16 %v571
    %v816 = vunpack.c.h.b16 %v571
    %v817 = vunpack.c.l.b16 %v572
    %v818 = vunpack.c.h.b16 %v572
    %v819 = vunpack.c.l.b16 %v573
    %v820 = vunpack.c.h.b16 %v573
    %v821 = vunpack.c.l.b16 %v574
    %v822 = vunpack.c.h.b16 %v574
    %v823 = vunpack.c.l.b16 %v575
    %v824 = vunpack.c.h.b16 %v575
    %v825 = vunpack.c.l.b16 %v576
    %v826 = vunpack.c.h.b16 %v576
    %v827 = vunpack.c.l.b16 %v577
    %v828 = vunpack.c.h.b16 %v577
    %v829 = vunpack.c.l.b16 %v578
    %v830 = vunpack.c.h.b16 %v578
    %v831 = vunpack.c.l.b16 %v579
    %v832 = vunpack.c.h.b16 %v579
    %v833 = vunpack.c.l.b16 %v580
    %v834 = vunpack.c.h.b16 %v580
    %v835 = vunpack.c.l.b16 %v581
    %v836 = vunpack.c.h.b16 %v581
    %v837 = vunpack.c.l.b16 %v582
    %v838 = vunpack.c.h.b16 %v582
    %v839 = vunpack.c.l.b16 %v583
    %v840 = vunpack.c.h.b16 %v583
    %v841 = vunpack.c.l.b16 %v584
    %v842 = vunpack.c.h.b16 %v584
    %v843 = vunpack.c.l.b16 %v585
    %v844 = vunpack.c.h.b16 %v585
    %v845 = vunpack.c.l.b16 %v586
    %v846 = vunpack.c.h.b16 %v586
    %v847 = vunpack.c.l.b16 %v587
    %v848 = vunpack.c.h.b16 %v587
    %v849 = vunpack.c.l.b16 %v588
    %v850 = vunpack.c.h.b16 %v588
    %v851 = vunpack.c.l.b16 %v589
    %v852 = vunpack.c.h.b16 %v589
    %v853 = vunpack.c.l.b16 %v590
    %v854 = vunpack.c.h.b16 %v590
    %v855 = vunpack.c.l.b16 %v591
    %v856 = vunpack.c.h.b16 %v591
    %v857 = vunpack.c.l.b16 %v592
    %v858 = vunpack.c.h.b16 %v592
    %v859 = vunpack.c.l.b16 %v593
    %v860 = vunpack.c.h.b16 %v593
    %v861 = vunpack.c.l.b16 %v594
    %v862 = vunpack.c.h.b16 %v594
    %v863 = vunpack.c.l.b16 %v595
    %v864 = vunpack.c.h.b16 %v595
    %v865 = vunpack.c.l.b16 %v596
    %v866 = vunpack.c.h.b16 %v596
    %v867 = vunpack.c.l.b16 %v597
    %v868 = vunpack.c.h.b16 %v597
    %v869 = vunpack.c.l.b16 %v598
    %v870 = vunpack.c.h.b16 %v598
    %v871 = vunpack.c.l.b16 %v599
    %v872 = vunpack.c.h.b16 %v599
    %v873 = vunpack.c.l.b16 %v600
    %v874 = vunpack.c.h.b16 %v600
    %v875 = vunpack.c.l.b16 %v601
    %v876 = vunpack.c.h.b16 %v601
    %v877 = vunpack.c.l.b16 %v602
    %v878 = vunpack.c.h.b16 %v602
    %v879 = vunpack.c.l.b16 %v603
    %v880 = vunpack.c.h.b16 %v603
    %v881 = vunpack.c.l.b16 %v604
    %v882 = vunpack.c.h.b16 %v604
    %v883 = vunpack.c.l.b16 %v605
    %v884 = vunpack.c.h.b16 %v605
    %v885 = vunpack.c.l.b16 %v606
    %v886 = vunpack.c.h.b16 %v606
    %v887 = vunpack.c.l.b16 %v607
    %v888 = vunpack.c.h.b16 %v607
    %v889 = vunpack.c.l.b16 %v608
    %v890 = vunpack.c.h.b16 %v608
    %v891 = vunpack.c.l.b16 %v609
    %v892 = vunpack.c.h.b16 %v609
    %v893 = vunpack.c.l.b16 %v610
    %v894 = vunpack.c.h.b16 %v610
    %v895 = vunpack.c.l.b16 %v611
    %v896 = vunpack.c.h.b16 %v611
    %v897 = vunpack.c.l.b16 %v612
    %v898 = vunpack.c.h.b16 %v612
    %v899 = vunpack.c.l.b16 %v613
    %v900 = vunpack.c.h.b16 %v613
    %v901 = vunpack.c.l.b16 %v614
    %v902 = vunpack.c.h.b16 %v614
    %v903 = vpack.c.b16 %v713, %v711
    %v904 = vpack.c.b16 %v714, %v712
    %v905 = vpack.c.b16 %v717, %v715
    %v906 = vpack.c.b16 %v718, %v716
    %v907 = vpack.c.b16 %v721, %v719
    %v908 = vpack.c.b16 %v722, %v720
    %v909 = vpack.c.b16 %v725, %v723
    %v910 = vpack.c.b16 %v726, %v724
    %v911 = vpack.c.b16 %v729, %v727
    %v912 = vpack.c.b16 %v730, %v728
    %v913 = vpack.c.b16 %v733, %v731
    %v914 = vpack.c.b16 %v734, %v732
    %v915 = vpack.c.b16 %v737, %v735
    %v916 = vpack.c.b16 %v738, %v736
    %v917 = vpack.c.b16 %v741, %v739
    %v918 = vpack.c.b16 %v742, %v740
    %v919 = vpack.c.b16 %v745, %v743
    %v920 = vpack.c.b16 %v746, %v744
    %v921 = vpack.c.b16 %v749, %v747
    %v922 = vpack.c.b16 %v750, %v748
    %v923 = vpack.c.b16 %v753, %v751
    %v924 = vpack.c.b16 %v754, %v752
    %v925 = vpack.c.b16 %v757, %v755
    %v926 = vpack.c.b16 %v758, %v756
    %v927 = vpack.c.b16 %v761, %v759
    %v928 = vpack.c.b16 %v762, %v760
    %v929 = vpack.c.b16 %v765, %v763
    %v930 = vpack.c.b16 %v766, %v764
    %v931 = vpack.c.b16 %v769, %v767
    %v932 = vpack.c.b16 %v770, %v768
    %v933 = vpack.c.b16 %v773, %v771
    %v934 = vpack.c.b16 %v774, %v772
    %v935 = vpack.c.b16 %v777, %v775
    %v936 = vpack.c.b16 %v778, %v776
    %v937 = vpack.c.b16 %v781, %v779
    %v938 = vpack.c.b16 %v782, %v780
    %v939 = vpack.c.b16 %v785, %v783
    %v940 = vpack.c.b16 %v786, %v784
    %v941 = vpack.c.b16 %v789, %v787
    %v942 = vpack.c.b16 %v790, %v788
    %v943 = vpack.c.b16 %v793, %v791
    %v944 = vpack.c.b16 %v794, %v792
    %v945 = vpack.c.b16 %v797, %v795
    %v946 = vpack.c.b16 %v798, %v796
    %v947 = vpack.c.b16 %v801, %v799
    %v948 = vpack.c.b16 %v802, %v800
    %v949 = vpack.c.b16 %v805, %v803
    %v950 = vpack.c.b16 %v806, %v804
    %v951 = vpack.c.b16 %v809, %v807
    %v952 = vpack.c.b16 %v810, %v808
    %v953 = vpack.c.b16 %v813, %v811
    %v954 = vpack.c.b16 %v814, %v812
    %v955 = vpack.c.b16 %v817, %v815
    %v956 = vpack.c.b16 %v818, %v816
    %v957 = vpack.c.b16 %v821, %v819
    %v958 = vpack.c.b16 %v822, %v820
    %v959 = vpack.c.b16 %v825, %v823
    %v960 = vpack.c.b16 %v826, %v824
    %v961 = vpack.c.b16 %v829, %v827
    %v962 = vpack.c.b16 %v830, %v828
    %v963 = vpack.c.b16 %v833, %v831
    %v964 = vpack.c.b16 %v834, %v832
    %v965 = vpack.c.b16 %v837, %v835
    %v966 = vpack.c.b16 %v838, %v836
    %v967 = vpack.c.b16 %v841, %v839
    %v968 = vpack.c.b16 %v842, %v840
    %v969 = vpack.c.b16 %v845, %v843
    %v970 = vpack.c.b16 %v846, %v844
    %v971 = vpack.c.b16 %v849, %v847
    %v972 = vpack.c.b16 %v850, %v848
    %v973 = vpack.c.b16 %v853, %v851
    %v974 = vpack.c.b16 %v854, %v852
    %v975 = vpack.c.b16 %v857, %v855
    %v976 = vpack.c.b16 %v858, %v856
    %v977 = vpack.c.b16 %v861, %v859
    %v978 = vpack.c.b16 %v862, %v860
    %v979 = vpack.c.b16 %v865, %v863
    %v980 = vpack.c.b16 %v866, %v864
    %v981 = vpack.c.b16 %v869, %v867
    %v982 = vpack.c.b16 %v870, %v868
    %v983 = vpack.c.b16 %v873, %v871
    %v984 = vpack.c.b16 %v874, %v872
    %v985 = vpack.c.b16 %v877, %v875
    %v986 = vpack.c.b16 %v878, %v876
    %v987 = vpack.c.b16 %v881, %v879
    %v988 = vpack.c.b16 %v882, %v880
    %v989 = vpack.c.b16 %v885, %v883
    %v990 = vpack.c.b16 %v886, %v884
    %v991 = vpack.c.b16 %v889, %v887
    %v992 = vpack.c.b16 %v890, %v888
    %v993 = vpack.c.b16 %v893, %v891
    %v994 = vpack.c.b16 %v894, %v892
    %v995 = vpack.c.b16 %v897, %v895
    %v996 = vpack.c.b16 %v898, %v896
    %v997 = vpack.c.b16 %v901, %v899
    %v998 = vpack.c.b16 %v902, %v900
    %1095 = vmatprep.subr.bf16.mxu0 %v904
    %1096 = vmatpush1.bf16.msra.mxu0 %v903
    %1097 = vmatprep.subr.bf16.mxu0 %v906
    %1098 = vmatpush1.bf16.msra.mxu0 %v905
    %1099 = vmatprep.subr.bf16.mxu0 %v908
    %1100 = vmatpush1.bf16.msra.mxu0 %v907
    %1101 = vmatprep.subr.bf16.mxu0 %v910
    %1102 = vmatpush1.bf16.msra.mxu0 %v909
    %1103 = vmatprep.subr.bf16.mxu0 %v912
    %1104 = vmatpush1.bf16.msra.mxu0 %v911
    %1105 = vmatprep.subr.bf16.mxu0 %v914
    %1106 = vmatpush1.bf16.msra.mxu0 %v913
    %1107 = vmatprep.subr.bf16.mxu0 %v916
    %1108 = vmatpush1.bf16.msra.mxu0 %v915
    %1109 = vmatprep.subr.bf16.mxu0 %v918
    %1110 = vmatpush1.bf16.msra.mxu0 %v917
    %1111 = vmatprep.subr.bf16.mxu0 %v920
    %1112 = vmatpush1.bf16.msra.mxu0 %v919
    %1113 = vmatprep.subr.bf16.mxu0 %v922
    %1114 = vmatpush1.bf16.msra.mxu0 %v921
    %1115 = vmatprep.subr.bf16.mxu0 %v924
    %1116 = vmatpush1.bf16.msra.mxu0 %v923
    %1117 = vmatprep.subr.bf16.mxu0 %v926
    %1118 = vmatpush1.bf16.msra.mxu0 %v925
    %1119 = vmatprep.subr.bf16.mxu0 %v928
    %1120 = vmatpush1.bf16.msra.mxu0 %v927
    %1121 = vmatprep.subr.bf16.mxu0 %v930
    %1122 = vmatpush1.bf16.msra.mxu0 %v929
    %1123 = vmatprep.subr.bf16.mxu0 %v932
    %1124 = vmatpush1.bf16.msra.mxu0 %v931
    %1125 = vmatprep.subr.bf16.mxu0 %v934
    %1126 = vmatpush1.bf16.msra.mxu0 %v933
    %1127 = vmatprep.mubr.bf16.mxu0 %v514
    %1128 = vmatmul.mubr.bf16.gmra.mrb[0].mxu0 %v513
    %v1129 = vpop.f32.mrb[0].mxu0
    %v1130 = vadd.f32 0.0, %v1129
    %v1131 = vpop.f32.mrb[0].mxu0
    %v1132 = vadd.f32 0.0, %v1131
    %v1133 = vpop.f32.mrb[0].mxu0
    %v1134 = vadd.f32 0.0, %v1133
    %v1135 = vpop.f32.mrb[0].mxu0
    %v1136 = vadd.f32 0.0, %v1135
    %1137 = vdwg.mxu0
    %1138 = vmatprep.subr.bf16.mxu0 %v936
    %1139 = vmatpush1.bf16.msra.mxu0 %v935
    %1140 = vmatprep.subr.bf16.mxu0 %v938
    %1141 = vmatpush1.bf16.msra.mxu0 %v937
    %1142 = vmatprep.subr.bf16.mxu0 %v940
    %1143 = vmatpush1.bf16.msra.mxu0 %v939
    %1144 = vmatprep.subr.bf16.mxu0 %v942
    %1145 = vmatpush1.bf16.msra.mxu0 %v941
    %1146 = vmatprep.subr.bf16.mxu0 %v944
    %1147 = vmatpush1.bf16.msra.mxu0 %v943
    %1148 = vmatprep.subr.bf16.mxu0 %v946
    %1149 = vmatpush1.bf16.msra.mxu0 %v945
    %1150 = vmatprep.subr.bf16.mxu0 %v948
    %1151 = vmatpush1.bf16.msra.mxu0 %v947
    %1152 = vmatprep.subr.bf16.mxu0 %v950
    %1153 = vmatpush1.bf16.msra.mxu0 %v949
    %1154 = vmatprep.subr.bf16.mxu0 %v952
    %1155 = vmatpush1.bf16.msra.mxu0 %v951
    %1156 = vmatprep.subr.bf16.mxu0 %v954
    %1157 = vmatpush1.bf16.msra.mxu0 %v953
    %1158 = vmatprep.subr.bf16.mxu0 %v956
    %1159 = vmatpush1.bf16.msra.mxu0 %v955
    %1160 = vmatprep.subr.bf16.mxu0 %v958
    %1161 = vmatpush1.bf16.msra.mxu0 %v957
    %1162 = vmatprep.subr.bf16.mxu0 %v960
    %1163 = vmatpush1.bf16.msra.mxu0 %v959
    %1164 = vmatprep.subr.bf16.mxu0 %v962
    %1165 = vmatpush1.bf16.msra.mxu0 %v961
    %1166 = vmatprep.subr.bf16.mxu0 %v964
    %1167 = vmatpush1.bf16.msra.mxu0 %v963
    %1168 = vmatprep.subr.bf16.mxu0 %v966
    %1169 = vmatpush1.bf16.msra.mxu0 %v965
    %1170 = vmatprep.mubr.bf16.mxu0 %v516
    %1171 = vmatmul.mubr.bf16.gmra.mrb[0].mxu0 %v515
    %v1172 = vpop.f32.mrb[0].mxu0
    %v1173 = vadd.f32 %v1130, %v1172
    %v1174 = vpop.f32.mrb[0].mxu0
    %v1175 = vadd.f32 %v1132, %v1174
    %v1176 = vpop.f32.mrb[0].mxu0
    %v1177 = vadd.f32 %v1134, %v1176
    %v1178 = vpop.f32.mrb[0].mxu0
    %v1179 = vadd.f32 %v1136, %v1178
    %1180 = vdwg.mxu0
    %1181 = vmatprep.subr.bf16.mxu0 %v968
    %1182 = vmatpush1.bf16.msra.mxu0 %v967
    %1183 = vmatprep.subr.bf16.mxu0 %v970
    %1184 = vmatpush1.bf16.msra.mxu0 %v969
    %1185 = vmatprep.subr.bf16.mxu0 %v972
    %1186 = vmatpush1.bf16.msra.mxu0 %v971
    %1187 = vmatprep.subr.bf16.mxu0 %v974
    %1188 = vmatpush1.bf16.msra.mxu0 %v973
    %1189 = vmatprep.subr.bf16.mxu0 %v976
    %1190 = vmatpush1.bf16.msra.mxu0 %v975
    %1191 = vmatprep.subr.bf16.mxu0 %v978
    %1192 = vmatpush1.bf16.msra.mxu0 %v977
    %1193 = vmatprep.subr.bf16.mxu0 %v980
    %1194 = vmatpush1.bf16.msra.mxu0 %v979
    %1195 = vmatprep.subr.bf16.mxu0 %v982
    %1196 = vmatpush1.bf16.msra.mxu0 %v981
    %1197 = vmatprep.subr.bf16.mxu0 %v984
    %1198 = vmatpush1.bf16.msra.mxu0 %v983
    %1199 = vmatprep.subr.bf16.mxu0 %v986
    %1200 = vmatpush1.bf16.msra.mxu0 %v985
    %1201 = vmatprep.subr.bf16.mxu0 %v988
    %1202 = vmatpush1.bf16.msra.mxu0 %v987
    %1203 = vmatprep.subr.bf16.mxu0 %v990
    %1204 = vmatpush1.bf16.msra.mxu0 %v989
    %1205 = vmatprep.subr.bf16.mxu0 %v992
    %1206 = vmatpush1.bf16.msra.mxu0 %v991
    %1207 = vmatprep.subr.bf16.mxu0 %v994
    %1208 = vmatpush1.bf16.msra.mxu0 %v993
    %1209 = vmatprep.subr.bf16.mxu0 %v996
    %1210 = vmatpush1.bf16.msra.mxu0 %v995
    %1211 = vmatprep.subr.bf16.mxu0 %v998
    %1212 = vmatpush1.bf16.msra.mxu0 %v997
    %1213 = vmatprep.mubr.bf16.mxu0 %v518
    %1214 = vmatmul.mubr.bf16.gmra.mrb[0].mxu0 %v517
    %v1215 = vpop.f32.mrb[0].mxu0
    %v1216 = vadd.f32 %v1173, %v1215
    %v1217 = vpop.f32.mrb[0].mxu0
    %v1218 = vadd.f32 %v1175, %v1217
    %v1219 = vpop.f32.mrb[0].mxu0
    %v1220 = vadd.f32 %v1177, %v1219
    %v1221 = vpop.f32.mrb[0].mxu0
    %v1222 = vadd.f32 %v1179, %v1221
    %1223 = vdwg.mxu0
    %v1224 = vrot.slane %v1218, 1
    %v1225 = vrot.slane %v1222, 1
    %v1226 = vlaneseq
    %v1227 = vshrl.u32 %v1226, 7
    %vm1228 = vcmp.lt.s32.totalorder %v1227, 7
    %v1229 = vsel %vm1228, %v1224, %v1225
    %v1230 = vsel %vm1228, %v1225, %v1224
    %v1231 = vadd.f32 %v1216, %v1229
    %v1232 = vadd.f32 %v1220, %v1230
    %v1233 = vld [vmem:[%s4] sm:$0xff]
    %v1234 = vld [vmem:[%s4 + $0x8] sm:$0xff]
    %v1235 = vadd.f32 %v1231, %v1233
    %v1236 = vadd.f32 %v1232, %v1234
    %v1237 = vmax.f32 %v1235, 0.0
    %v1238 = vmax.f32 %v1236, 0.0
    %v1239 = vrot.slane %v1237, 4
    %v1240 = vmax.f32 %v1237, %v1239
    %v1241 = vrot.slane %v1240, 2
    %v1242 = vmax.f32 %v1240, %v1241
    %v1243 = vrot.slane %v1242, 1
    %v1244 = vmax.f32 %v1242, %v1243
    %v1245 = vrot.slane %v1238, 4
    %v1246 = vmax.f32 %v1238, %v1245
    %v1247 = vrot.slane %v1246, 2
    %v1248 = vmax.f32 %v1246, %v1247
    %v1249 = vrot.slane %v1248, 1
    %v1250 = vmax.f32 %v1248, %v1249
    %v1251 = vpack.c.bf16 %v1244, %v1244
    %v1252 = vpack.c.bf16 %v1250, %v1250
    %v1253 = vld [vmem:[#allocation7] sm:$0xf]
    %v1254 = vld [vmem:[#allocation7 + $0x4] sm:$0xf]
    %v1255 = vld [vmem:[#allocation7 + $0x8] sm:$0xf]
    %v1256 = vld [vmem:[#allocation7 + $0xc] sm:$0xf]
    %v1257 = vld [vmem:[#allocation7 + $0x10] sm:$0xf]
    %v1258 = vld [vmem:[#allocation7 + $0x14] sm:$0xf]
    %v1259 = vld [vmem:[#allocation7 + $0x18] sm:$0xf]
    %v1260 = vld [vmem:[#allocation7 + $0x1c] sm:$0xf]
    %v1261 = vld [vmem:[#allocation7 + $0x20] sm:$0xf]
    %v1262 = vld [vmem:[#allocation7 + $0x24] sm:$0xf]
    %v1263 = vld [vmem:[#allocation7 + $0x28] sm:$0xf]
    %v1264 = vld [vmem:[#allocation7 + $0x2c] sm:$0xf]
    %v1265 = vld [vmem:[#allocation7 + $0x30] sm:$0xf]
    %v1266 = vld [vmem:[#allocation7 + $0x34] sm:$0xf]
    %v1267 = vld [vmem:[#allocation7 + $0x38] sm:$0xf]
    %v1268 = vld [vmem:[#allocation7 + $0x3c] sm:$0xf]
    %v1269 = vld [vmem:[%s6] sm:$0x1]
    %v1271 = vlaneseq
    %v1272 = vshrl.u32 %v1271, 7
    %v1273 = vsub.s32 0, %v1272
    %v1274 = vrot.slane %v1269, %v1273
    %v1278 = vunpack.c.l.b16 %v1251
    %v1279 = vunpack.c.l.b16 %v1252
    %vm1280 = vcmask 1041409
    %v1281 = vsel %vm1280, %v1279, %v1278
    %v1282 = vpack.c.b16 %v1281, %v1281
    %v1300 = vunpack.c.l.b16 %v1253
    %v1301 = vunpack.c.l.b16 %v1254
    %v1302 = vunpack.c.l.b16 %v1255
    %v1303 = vunpack.c.l.b16 %v1256
    %v1304 = vunpack.c.l.b16 %v1257
    %v1305 = vunpack.c.l.b16 %v1258
    %v1306 = vunpack.c.l.b16 %v1259
    %v1307 = vunpack.c.l.b16 %v1260
    %v1308 = vunpack.c.l.b16 %v1261
    %v1309 = vunpack.c.l.b16 %v1262
    %v1310 = vunpack.c.l.b16 %v1263
    %v1311 = vunpack.c.l.b16 %v1264
    %v1312 = vunpack.c.l.b16 %v1265
    %v1313 = vunpack.c.l.b16 %v1266
    %v1314 = vunpack.c.l.b16 %v1267
    %v1315 = vunpack.c.l.b16 %v1268
    %v1316 = vpack.c.b16 %v1301, %v1300
    %v1317 = vpack.c.b16 %v1303, %v1302
    %v1318 = vpack.c.b16 %v1305, %v1304
    %v1319 = vpack.c.b16 %v1307, %v1306
    %v1320 = vpack.c.b16 %v1309, %v1308
    %v1321 = vpack.c.b16 %v1311, %v1310
    %v1322 = vpack.c.b16 %v1313, %v1312
    %v1323 = vpack.c.b16 %v1315, %v1314
    %1332 = vmatprep.subr.bf16.mxu0 0
    %1333 = vmatpush1.bf16.msra.mxu0 %v1316
    %1334 = vmatprep.subr.bf16.mxu0 0
    %1335 = vmatpush1.bf16.msra.mxu0 %v1317
    %1336 = vmatprep.subr.bf16.mxu0 0
    %1337 = vmatpush1.bf16.msra.mxu0 %v1318
    %1338 = vmatprep.subr.bf16.mxu0 0
    %1339 = vmatpush1.bf16.msra.mxu0 %v1319
    %1340 = vmatprep.subr.bf16.mxu0 0
    %1341 = vmatpush1.bf16.msra.mxu0 %v1320
    %1342 = vmatprep.subr.bf16.mxu0 0
    %1343 = vmatpush1.bf16.msra.mxu0 %v1321
    %1344 = vmatprep.subr.bf16.mxu0 0
    %1345 = vmatpush1.bf16.msra.mxu0 %v1322
    %1346 = vmatprep.subr.bf16.mxu0 0
    %1347 = vmatpush1.bf16.msra.mxu0 %v1323
    %1348 = vmatprep.subr.bf16.mxu0 0
    %1349 = vmatpush1.bf16.msra.mxu0 0
    %1350 = vmatprep.subr.bf16.mxu0 0
    %1351 = vmatpush1.bf16.msra.mxu0 0
    %1352 = vmatprep.subr.bf16.mxu0 0
    %1353 = vmatpush1.bf16.msra.mxu0 0
    %1354 = vmatprep.subr.bf16.mxu0 0
    %1355 = vmatpush1.bf16.msra.mxu0 0
    %1356 = vmatprep.subr.bf16.mxu0 0
    %1357 = vmatpush1.bf16.msra.mxu0 0
    %1358 = vmatprep.subr.bf16.mxu0 0
    %1359 = vmatpush1.bf16.msra.mxu0 0
    %1360 = vmatprep.subr.bf16.mxu0 0
    %1361 = vmatpush1.bf16.msra.mxu0 0
    %1362 = vmatprep.subr.bf16.mxu0 0
    %1363 = vmatpush1.bf16.msra.mxu0 0
    %1364 = vmatprep.mubr.bf16.mxu0 0
    %1365 = vmatmul.mubr.bf16.gmra.mrb[0].mxu0 %v1282
    %v1366 = vpop.f32.mrb[0].mxu0
    %v1367 = vadd.f32 %v1274, %v1366
    %v1368 = vpop.f32.mrb[0].mxu0
    %v1369 = vpop.f32.mrb[0].mxu0
    %v1370 = vpop.f32.mrb[0].mxu0
    %1371 = vdwg.mxu0
    %1372 = vst [vmem:[#allocation8] sm:$0x3] %v1367
    // Predicated region
    $region42: #{bert_cnn_forward.1} parent=1 // pred_check
      _
    $region43: #{bert_cnn_forward.1} parent=1 // pred_check_branch
      %1374 = sbr.rel (0) target = $region45
    $region44: #{bert_cnn_forward.1} parent=1 // pred_region
      %s1376 = ssub.s32 32, 32
      %1377 = vsyncadd [#allocation4], %s1376
      %s1379 = sshll.u32 [#allocation8], 4
      %s1380 = int_to_ptr.vmem [resolvable:$true] %s1379
      %1382 = dma.vmem_to_hbm [thread:$0]  %s1380, 32, %s7, [#allocation4]
    $region45: #{bert_cnn_forward.1} parent=1 // pred_fallthru
      _
    // Predicated region
    $region46: #{bert_cnn_forward.1} parent=1 // pred_check
      _
    $region47: #{bert_cnn_forward.1} parent=1 // pred_check_branch
      %1384 = sbr.rel (0) target = $region49
    $region48: #{bert_cnn_forward.1} parent=1 // pred_region
      %1385 = dma.done [#allocation4], 32
    $region49: #{bert_cnn_forward.1} parent=1 // pred_fallthru
      _
    %1386 = vsyncpa [#allocation3], 1
    %1387 = vsyncpa [#allocation6], 1
    %1388 = vsyncpa [#allocation4], 1

</llo_original>
